<compile_context>
chip_gen: v7x
topology: tpu7x:2x2x1
jax: 0.10.0
libtpu: 0.0.40
codegen_flags: <defaults>
</compile_context>

<pallas_src>
import functools

import jax
import jax.numpy as jnp
from jax.experimental import pallas as pl
from jax.experimental.pallas import tpu as pltpu

IN_DIM = 784
HID_DIM = 100     # logical hidden width (matches the PyTorch module)
HID_PAD = 128     # lane-aligned padded hidden width used inside the kernel
OUT_DIM = 10


def _round_up(n, m):
    return ((n + m - 1) // m) * m


def prepare_params(w1, b1, w2, b2, *, compute_dtype=jnp.float32):
    """One-time parameter prep (hoisted out of the per-call path).

    w1: [784,100], b1: [100], w2: [100,10], b2: [10]  (i.e. torch Linear.weight.T).
    Hidden dim is zero-padded 100 -> 128; the padded W1 columns / b1 entries / W2 rows
    are mathematically inert (ReLU(0)=0 contributes nothing to the second matmul).
    W1 may be stored in bf16 (compute_dtype); everything after the first matmul is f32.
    """
    w1p = jnp.zeros((IN_DIM, HID_PAD), compute_dtype).at[:, :HID_DIM].set(
        w1.astype(compute_dtype))
    b1p = jnp.zeros((1, HID_PAD), jnp.float32).at[:, :HID_DIM].set(
        b1.astype(jnp.float32))
    w2p = jnp.zeros((HID_PAD, OUT_DIM), jnp.float32).at[:HID_DIM, :].set(
        w2.astype(jnp.float32))
    b2p = b2.reshape(1, OUT_DIM).astype(jnp.float32)
    return w1p, b1p, w2p, b2p


def mlp_kernel(x_ref, w1_ref, b1_ref, w2_ref, b2_ref, o_ref):
    # ---- Linear(784 -> 128 padded) + ReLU (MXU matmul, f32 accumulation) ----
    h = jnp.dot(x_ref[...], w1_ref[...], preferred_element_type=jnp.float32)
    h = jnp.maximum(h + b1_ref[...], 0.0)          # (TB,128) + (1,128) broadcast

    # ---- Dropout(p=0.3): identity in eval/inference mode ----

    # ---- Linear(128 padded -> 10) ----
    logits = jnp.dot(h, w2_ref[...], preferred_element_type=jnp.float32)
    logits = logits + b2_ref[...]                  # (TB,10) + (1,10) broadcast

    # ---- log_softmax over dim=1 (numerically stable, strictly row-wise) ----
    m = jnp.max(logits, axis=-1, keepdims=True)
    shifted = logits - m
    lse = jnp.log(jnp.sum(jnp.exp(shifted), axis=-1, keepdims=True))
    o_ref[...] = (shifted - lse).astype(o_ref.dtype)


@functools.partial(jax.jit, static_argnames=("block_b",))
def network_forward(x, w1p, b1p, w2p, b2p, *, block_b=2048):
    """x: [B, 784] (f32 or bf16). Padded params from prepare_params().
    Returns log-probabilities [B, 10] f32."""
    B = x.shape[0]

    # Batch tile: multiple of 8, capped at block_b, and capped at ceil(B/2)
    # rounded up to 8 so there are >= 2 grid tiles whenever B > 8 (both v7x
    # TensorCores get work; negligible extra step cost on v5e/v6e).
    tb = max(8, min(block_b, _round_up(pl.cdiv(B, 2), 8)))
    n_tiles = pl.cdiv(B, tb)           # partial last tile handled by Pallas

    itemsize_x = x.dtype.itemsize
    cost = pl.CostEstimate(
        flops=2 * B * IN_DIM * HID_PAD + 2 * B * HID_PAD * OUT_DIM,
        transcendentals=B * (OUT_DIM + 1),           # exp per logit + log per row
        bytes_accessed=(B * IN_DIM * itemsize_x
                        + IN_DIM * HID_PAD * w1p.dtype.itemsize
                        + (HID_PAD + HID_PAD * OUT_DIM + OUT_DIM) * 4
                        + B * OUT_DIM * 4),
    )

    return pl.pallas_call(
        mlp_kernel,
        out_shape=jax.ShapeDtypeStruct((B, OUT_DIM), jnp.float32),
        grid=(n_tiles,),
        in_specs=[
            pl.BlockSpec((tb, IN_DIM), lambda i: (i, 0)),        # x  (tiled over batch)
            pl.BlockSpec((IN_DIM, HID_PAD), lambda i: (0, 0)),   # W1 (VMEM-resident)
            pl.BlockSpec((1, HID_PAD), lambda i: (0, 0)),        # b1 (resident)
            pl.BlockSpec((HID_PAD, OUT_DIM), lambda i: (0, 0)),  # W2 (resident)
            pl.BlockSpec((1, OUT_DIM), lambda i: (0, 0)),        # b2 (resident)
        ],
        out_specs=pl.BlockSpec((tb, OUT_DIM), lambda i: (i, 0)),
        compiler_params=pltpu.CompilerParams(
            dimension_semantics=("parallel",),       # megacore sharding on v7x
            vmem_limit_bytes=64 * 1024 * 1024,       # TB=2048 f32 fits on v5e too
        ),
        cost_estimate=cost,
    )(x, w1p, b1p, w2p, b2p)


def _reference(x, w1, b1, w2, b2):
    h = jnp.maximum(x @ w1 + b1, 0.0)
    return jax.nn.log_softmax(h @ w2 + b2, axis=1)


if __name__ == "__main__":
    key = jax.random.PRNGKey(0)
    kx, kw1, kw2, kx2, kx3 = jax.random.split(key, 5)

    # 1) Spec-faithful parameters: Network.init_weights('zero') -> all zeros.
    B = 8
    x = jax.random.normal(kx, (B, IN_DIM), dtype=jnp.float32)
    w1_z = jnp.zeros((IN_DIM, HID_DIM), jnp.float32)
    b1_z = jnp.zeros((HID_DIM,), jnp.float32)
    w2_z = jnp.zeros((HID_DIM, OUT_DIM), jnp.float32)
    b2_z = jnp.zeros((OUT_DIM,), jnp.float32)
    params_z = prepare_params(w1_z, b1_z, w2_z, b2_z)
    out_z = jax.block_until_ready(network_forward(x, *params_z))
    ref_z = _reference(x, w1_z, b1_z, w2_z, b2_z)
    assert out_z.shape == (B, OUT_DIM)
    assert jnp.allclose(out_z, ref_z, atol=1e-5, rtol=1e-5), "mismatch (zero init)"

    # 2) Random weights, B not a multiple of 8 -> exercises partial last tile
    #    (no jnp.pad of the batch) and the >=2-tile split.
    B2 = 37
    x2 = jax.random.normal(kx2, (B2, IN_DIM), dtype=jnp.float32)
    w1_r = 0.05 * jax.random.normal(kw1, (IN_DIM, HID_DIM), dtype=jnp.float32)
    w2_r = 0.05 * jax.random.normal(kw2, (HID_DIM, OUT_DIM), dtype=jnp.float32)
    b1_r = jnp.zeros((HID_DIM,), jnp.float32)
    b2_r = jnp.zeros((OUT_DIM,), jnp.float32)
    params_r = prepare_params(w1_r, b1_r, w2_r, b2_r)
    out_r = jax.block_until_ready(network_forward(x2, *params_r))
    ref_r = _reference(x2, w1_r, b1_r, w2_r, b2_r)
    assert out_r.shape == (B2, OUT_DIM)
    assert jnp.allclose(out_r, ref_r, atol=1e-5, rtol=1e-5), "mismatch (random init)"

    # 3) bf16 x / W1 path (halves the dominant HBM stream); f32 accumulation
    #    and f32 bias/softmax. Compared against an f32 reference evaluated on
    #    the same bf16-cast inputs (loose tolerance).
    B3 = 24
    x3 = jax.random.normal(kx3, (B3, IN_DIM), dtype=jnp.float32).astype(jnp.bfloat16)
    params_bf = prepare_params(w1_r, b1_r, w2_r, b2_r, compute_dtype=jnp.bfloat16)
    out_bf = jax.block_until_ready(network_forward(x3, *params_bf))
    ref_bf = _reference(x3.astype(jnp.float32),
                        params_bf[0][:, :HID_DIM].astype(jnp.float32),
                        b1_r, w2_r, b2_r)
    assert out_bf.shape == (B3, OUT_DIM)
    assert bool(jnp.all(jnp.isfinite(out_bf)))
    assert jnp.allclose(out_bf, ref_bf, atol=5e-2, rtol=5e-2), "mismatch (bf16 path)"

    print("KERNEL_OK")
</pallas_src>

<mosaic_0001>
module attributes {stable_mosaic.version = 11 : i64} {
  func.func @mlp_kernel(%arg0: i32, %arg1: memref<8x784xf32, #tpu.memory_space<vmem>>, %arg2: memref<784x128xf32, #tpu.memory_space<vmem>>, %arg3: memref<1x128xf32, #tpu.memory_space<vmem>>, %arg4: memref<128x10xf32, #tpu.memory_space<vmem>>, %arg5: memref<1x10xf32, #tpu.memory_space<vmem>>, %arg6: memref<8x10xf32, #tpu.memory_space<vmem>>) attributes {dimension_semantics = [#tpu.dimension_semantics<parallel>], iteration_bounds = array<i64: 1>, scalar_prefetch = 0 : i64, scratch_operands = 0 : i64, tpu.core_type = #tpu.core_type<tc>, window_params = [{transform_indices = @transform_0, window_bounds = array<i64: 8, 784>}, {pipeline_mode = #tpu.pipeline_mode<synchronous>, transform_indices = @transform_1, window_bounds = array<i64: 784, 128>}, {pipeline_mode = #tpu.pipeline_mode<synchronous>, transform_indices = @transform_2, window_bounds = array<i64: 1, 128>}, {pipeline_mode = #tpu.pipeline_mode<synchronous>, transform_indices = @transform_3, window_bounds = array<i64: 128, 10>}, {pipeline_mode = #tpu.pipeline_mode<synchronous>, transform_indices = @transform_4, window_bounds = array<i64: 1, 10>}, {transform_indices = @transform_5, window_bounds = array<i64: 8, 10>}]} {
    %c0 = arith.constant 0 : index
    %c0_0 = arith.constant 0 : index
    %0 = vector.load %arg1[%c0, %c0_0] : memref<8x784xf32, #tpu.memory_space<vmem>>, vector<8x784xf32>
    %c0_1 = arith.constant 0 : index
    %c0_2 = arith.constant 0 : index
    %1 = vector.load %arg2[%c0_1, %c0_2] : memref<784x128xf32, #tpu.memory_space<vmem>>, vector<784x128xf32>
    %cst = arith.constant dense<0.000000e+00> : vector<8x128xf32>
    %2 = tpu.matmul %0, %1, %cst {dimension_numbers = #tpu.dot_dimension_numbers<[1], [0], [0], [1], [0, 0, 1, 1], [], []>} : vector<8x784xf32>, vector<784x128xf32>, vector<8x128xf32> -> vector<8x128xf32>
    %c0_3 = arith.constant 0 : index
    %c0_4 = arith.constant 0 : index
    %3 = vector.load %arg3[%c0_3, %c0_4] : memref<1x128xf32, #tpu.memory_space<vmem>>, vector<1x128xf32>
    %4 = vector.broadcast %3 : vector<1x128xf32> to vector<8x128xf32>
    %5 = arith.addf %2, %4 : vector<8x128xf32>
    %cst_5 = arith.constant 0.000000e+00 : f32
    %6 = vector.broadcast %cst_5 : f32 to vector<8x128xf32>
    %7 = arith.maximumf %5, %6 : vector<8x128xf32>
    %c0_6 = arith.constant 0 : index
    %c0_7 = arith.constant 0 : index
    %8 = vector.load %arg4[%c0_6, %c0_7] : memref<128x10xf32, #tpu.memory_space<vmem>>, vector<128x10xf32>
    %cst_8 = arith.constant dense<0.000000e+00> : vector<8x10xf32>
    %9 = tpu.matmul %7, %8, %cst_8 {dimension_numbers = #tpu.dot_dimension_numbers<[1], [0], [0], [1], [0, 0, 1, 1], [], []>} : vector<8x128xf32>, vector<128x10xf32>, vector<8x10xf32> -> vector<8x10xf32>
    %c0_9 = arith.constant 0 : index
    %c0_10 = arith.constant 0 : index
    %10 = vector.load %arg5[%c0_9, %c0_10] : memref<1x10xf32, #tpu.memory_space<vmem>>, vector<1x10xf32>
    %11 = vector.broadcast %10 : vector<1x10xf32> to vector<8x10xf32>
    %12 = arith.addf %9, %11 : vector<8x10xf32>
    %cst_11 = arith.constant dense<0xFF800000> : vector<8xf32>
    %13 = vector.multi_reduction <maximumf>, %12, %cst_11 [1] : vector<8x10xf32> to vector<8xf32>
    %14 = vector.shape_cast %13 : vector<8xf32> to vector<8x1xf32>
    %15 = vector.broadcast %14 : vector<8x1xf32> to vector<8x10xf32>
    %16 = arith.subf %12, %15 : vector<8x10xf32>
    %17 = math.exp %16 : vector<8x10xf32>
    %cst_12 = arith.constant dense<0.000000e+00> : vector<8xf32>
    %18 = vector.multi_reduction <add>, %17, %cst_12 [1] : vector<8x10xf32> to vector<8xf32>
    %19 = vector.shape_cast %18 : vector<8xf32> to vector<8x1xf32>
    %20 = math.log %19 : vector<8x1xf32>
    %21 = vector.broadcast %20 : vector<8x1xf32> to vector<8x10xf32>
    %22 = arith.subf %16, %21 : vector<8x10xf32>
    %c0_13 = arith.constant 0 : index
    %c0_14 = arith.constant 0 : index
    %23 = vector.load %arg6[%c0_13, %c0_14] : memref<8x10xf32, #tpu.memory_space<vmem>>, vector<8x10xf32>
    tpu.vector_store %arg6[%c0_13, %c0_14], %22 {strides = array<i32>} : memref<8x10xf32, #tpu.memory_space<vmem>>, vector<8x10xf32>,
    return
  }
  func.func @transform_0(%arg0: i32) -> (i32, i32) {
    %c0_i32 = arith.constant 0 : i32
    %c0_i32_0 = arith.constant 0 : i32
    return %arg0, %c0_i32 : i32, i32
  }
  func.func @transform_1(%arg0: i32) -> (i32, i32) {
    %c0_i32 = arith.constant 0 : i32
    %c0_i32_0 = arith.constant 0 : i32
    %c0_i32_1 = arith.constant 0 : i32
    return %c0_i32, %c0_i32_0 : i32, i32
  }
  func.func @transform_2(%arg0: i32) -> (i32, i32) {
    %c0_i32 = arith.constant 0 : i32
    %c0_i32_0 = arith.constant 0 : i32
    %c0_i32_1 = arith.constant 0 : i32
    return %c0_i32, %c0_i32_0 : i32, i32
  }
  func.func @transform_3(%arg0: i32) -> (i32, i32) {
    %c0_i32 = arith.constant 0 : i32
    %c0_i32_0 = arith.constant 0 : i32
    %c0_i32_1 = arith.constant 0 : i32
    return %c0_i32, %c0_i32_0 : i32, i32
  }
  func.func @transform_4(%arg0: i32) -> (i32, i32) {
    %c0_i32 = arith.constant 0 : i32
    %c0_i32_0 = arith.constant 0 : i32
    %c0_i32_1 = arith.constant 0 : i32
    return %c0_i32, %c0_i32_0 : i32, i32
  }
  func.func @transform_5(%arg0: i32) -> (i32, i32) {
    %c0_i32 = arith.constant 0 : i32
    %c0_i32_0 = arith.constant 0 : i32
    return %arg0, %c0_i32 : i32, i32
  }
}

</mosaic_0001>

<llo_original>
// kernel: network_forward.1
$region0: #{network_forward.1}
  #allocation0 [shape = 'u32[]', space=smem, size = 0x4, offset = 0x4, fixed_abs, tag = 'smem constant byte address 0x4 - core index']
  #allocation1 [shape = 'u32[144,128]{1,0:T(1,128)}', space=vmem, size = 0x12000, scoped, tag = 'internal scratch']
  %s0 = inlined_call_operand.hbm [shape: f32[8,784], index: 0, kind: input, shape index: {}]
  %s1 = inlined_call_operand.hbm [shape: f32[784,128], index: 1, kind: input, shape index: {}]
  %s2 = inlined_call_operand.hbm [shape: f32[1,128], index: 2, kind: input, shape index: {}]
  %s3 = inlined_call_operand.hbm [shape: f32[128,10], index: 3, kind: input, shape index: {}]
  %s4 = inlined_call_operand.hbm [shape: f32[1,10], index: 4, kind: input, shape index: {}]
  %s5 = inlined_call_operand.hbm [shape: f32[8,10], index: 5, kind: output, shape index: {}]
  %s6 = sld [smem:[#allocation0]]
  $region50: #{network_forward.1} parent=0
    _
  %s8 = ssub.s32 1, %s6
  %s9 = scalar_select 0, %s8, %s6
  $region1: #{network_forward.1} parent=0
    #allocation2 [shape = 'u8[28672]{0}', space=vmem, size = 0x7000, scoped, tag = 'input window, operand 0, single buffered']
    #allocation3 [shape = 's32[1]{0}', space=sflag, size = 0x4, scoped, tag = 'scoped memory for network_forward.1']
    #allocation4 [shape = 's32[1]{0}', space=sflag, size = 0x4, scoped, tag = 'scoped memory for network_forward.1']
    #allocation5 [shape = 'u8[401408]{0}', space=vmem, size = 0x62000, scoped, tag = 'input window, operand 1, single buffered']
    #allocation6 [shape = 's32[1]{0}', space=sflag, size = 0x4, scoped, tag = 'scoped memory for network_forward.1']
    #allocation7 [shape = 'u8[512]{0}', space=vmem, size = 0x400, scoped, tag = 'input window, operand 2, single buffered']
    #allocation8 [shape = 'u8[65536]{0}', space=vmem, size = 0x10000, scoped, tag = 'input window, operand 3, single buffered']
    #allocation9 [shape = 's32[1]{0}', space=sflag, size = 0x4, scoped, tag = 'scoped memory for network_forward.1']
    #allocation10 [shape = 'u8[512]{0}', space=vmem, size = 0x400, scoped, tag = 'input window, operand 4, single buffered']
    #allocation11 [shape = 'u8[4096]{0}', space=vmem, size = 0x1000, scoped, tag = 'output window, operand 0, single buffered']
    %10 = vsyncpa [#allocation3], 0
    %11 = vsyncpa [#allocation6], 0
    %12 = vsyncpa [#allocation9], 0
    %13 = vsyncpa [#allocation4], 0
    // Predicated region
    $region2: #{network_forward.1} parent=1 // pred_check
      _
    $region3: #{network_forward.1} parent=1 // pred_check_branch
      %15 = sbr.rel (0) target = $region5
    $region4: #{network_forward.1} parent=1 // pred_region
      %s17 = ssub.s32 896, 896
      %18 = vsyncadd [#allocation3], %s17
      %s20 = sshll.u32 [#allocation2], 4
      %s21 = int_to_ptr.vmem [resolvable:$true] %s20
      %23 = dma.hbm_to_vmem [thread:$0]  %s0, 896, %s21, [#allocation3]
    $region5: #{network_forward.1} parent=1 // pred_fallthru
      _
    // Predicated region
    $region6: #{network_forward.1} parent=1 // pred_check
      _
    $region7: #{network_forward.1} parent=1 // pred_check_branch
      %25 = sbr.rel (0) target = $region9
    $region8: #{network_forward.1} parent=1 // pred_region
      %s27 = ssub.s32 12544, 12544
      %28 = vsyncadd [#allocation6], %s27
      %s29 = sshll.u32 [#allocation5], 4
      %s30 = int_to_ptr.vmem [resolvable:$true] %s29
      %35 = dma.hbm_to_vmem [thread:$0]  %s1, 12544, %s30, [#allocation6], 128, 128, 8
    $region9: #{network_forward.1} parent=1 // pred_fallthru
      _
    // Predicated region
    $region10: #{network_forward.1} parent=1 // pred_check
      _
    $region11: #{network_forward.1} parent=1 // pred_check_branch
      %37 = sbr.rel (0) target = $region13
    $region12: #{network_forward.1} parent=1 // pred_region
      %s39 = ssub.s32 16, 16
      %40 = vsyncadd [#allocation6], %s39
      %s42 = sshll.u32 [#allocation7], 4
      %s43 = int_to_ptr.vmem [resolvable:$true] %s42
      %45 = dma.hbm_to_vmem [thread:$0]  %s2, 16, %s43, [#allocation6]
    $region13: #{network_forward.1} parent=1 // pred_fallthru
      _
    // Predicated region
    $region14: #{network_forward.1} parent=1 // pred_check
      _
    $region15: #{network_forward.1} parent=1 // pred_check_branch
      %47 = sbr.rel (0) target = $region17
    $region16: #{network_forward.1} parent=1 // pred_region
      %s49 = ssub.s32 2048, 2048
      %50 = vsyncadd [#allocation9], %s49
      %s51 = sshll.u32 [#allocation8], 4
      %s52 = int_to_ptr.vmem [resolvable:$true] %s51
      %57 = dma.hbm_to_vmem [thread:$0]  %s3, 2048, %s52, [#allocation9], 128, 128, 8
    $region17: #{network_forward.1} parent=1 // pred_fallthru
      _
    // Predicated region
    $region18: #{network_forward.1} parent=1 // pred_check
      _
    $region19: #{network_forward.1} parent=1 // pred_check_branch
      %59 = sbr.rel (0) target = $region21
    $region20: #{network_forward.1} parent=1 // pred_region
      %s61 = ssub.s32 16, 16
      %62 = vsyncadd [#allocation9], %s61
      %s64 = sshll.u32 [#allocation10], 4
      %s65 = int_to_ptr.vmem [resolvable:$true] %s64
      %67 = dma.hbm_to_vmem [thread:$0]  %s4, 16, %s65, [#allocation9]
    $region21: #{network_forward.1} parent=1 // pred_fallthru
      _
    // Predicated region
    $region22: #{network_forward.1} parent=1 // pred_check
      _
    $region23: #{network_forward.1} parent=1 // pred_check_branch
      %69 = sbr.rel (0) target = $region25
    $region24: #{network_forward.1} parent=1 // pred_region
      %70 = dma.done [#allocation3], 896
    $region25: #{network_forward.1} parent=1 // pred_fallthru
      _
    // Predicated region
    $region26: #{network_forward.1} parent=1 // pred_check
      _
    $region27: #{network_forward.1} parent=1 // pred_check_branch
      %72 = sbr.rel (0) target = $region29
    $region28: #{network_forward.1} parent=1 // pred_region
      %73 = dma.done [#allocation6], 12544
    $region29: #{network_forward.1} parent=1 // pred_fallthru
      _
    // Predicated region
    $region30: #{network_forward.1} parent=1 // pred_check
      _
    $region31: #{network_forward.1} parent=1 // pred_check_branch
      %75 = sbr.rel (0) target = $region33
    $region32: #{network_forward.1} parent=1 // pred_region
      %76 = dma.done [#allocation6], 16
    $region33: #{network_forward.1} parent=1 // pred_fallthru
      _
    // Predicated region
    $region34: #{network_forward.1} parent=1 // pred_check
      _
    $region35: #{network_forward.1} parent=1 // pred_check_branch
      %78 = sbr.rel (0) target = $region37
    $region36: #{network_forward.1} parent=1 // pred_region
      %79 = dma.done [#allocation9], 2048
    $region37: #{network_forward.1} parent=1 // pred_fallthru
      _
    // Predicated region
    $region38: #{network_forward.1} parent=1 // pred_check
      _
    $region39: #{network_forward.1} parent=1 // pred_check_branch
      %81 = sbr.rel (0) target = $region41
    $region40: #{network_forward.1} parent=1 // pred_region
      %82 = dma.done [#allocation9], 16
    $region41: #{network_forward.1} parent=1 // pred_fallthru
      _
    %v83 = vld [vmem:[#allocation2] sm:$0xff]
    %v84 = vld [vmem:[#allocation2 + $0x8] sm:$0xff]
    %v85 = vld [vmem:[#allocation2 + $0x10] sm:$0xff]
    %v86 = vld [vmem:[#allocation2 + $0x18] sm:$0xff]
    %v87 = vld [vmem:[#allocation2 + $0x20] sm:$0xff]
    %v88 = vld [vmem:[#allocation2 + $0x28] sm:$0xff]
    %v89 = vld [vmem:[#allocation2 + $0x30] sm:$0xff]
    %v90 = vld [vmem:[#allocation5] sm:$0xff]
    %v91 = vld [vmem:[#allocation5 + $0x8] sm:$0xff]
    %v92 = vld [vmem:[#allocation5 + $0x10] sm:$0xff]
    %v93 = vld [vmem:[#allocation5 + $0x18] sm:$0xff]
    %v94 = vld [vmem:[#allocation5 + $0x20] sm:$0xff]
    %v95 = vld [vmem:[#allocation5 + $0x28] sm:$0xff]
    %v96 = vld [vmem:[#allocation5 + $0x30] sm:$0xff]
    %v97 = vld [vmem:[#allocation5 + $0x38] sm:$0xff]
    %v98 = vld [vmem:[#allocation5 + $0x40] sm:$0xff]
    %v99 = vld [vmem:[#allocation5 + $0x48] sm:$0xff]
    %v100 = vld [vmem:[#allocation5 + $0x50] sm:$0xff]
    %v101 = vld [vmem:[#allocation5 + $0x58] sm:$0xff]
    %v102 = vld [vmem:[#allocation5 + $0x60] sm:$0xff]
    %v103 = vld [vmem:[#allocation5 + $0x68] sm:$0xff]
    %v104 = vld [vmem:[#allocation5 + $0x70] sm:$0xff]
    %v105 = vld [vmem:[#allocation5 + $0x78] sm:$0xff]
    %v106 = vld [vmem:[#allocation5 + $0x80] sm:$0xff]
    %v107 = vld [vmem:[#allocation5 + $0x88] sm:$0xff]
    %v108 = vld [vmem:[#allocation5 + $0x90] sm:$0xff]
    %v109 = vld [vmem:[#allocation5 + $0x98] sm:$0xff]
    %v110 = vld [vmem:[#allocation5 + $0xa0] sm:$0xff]
    %v111 = vld [vmem:[#allocation5 + $0xa8] sm:$0xff]
    %v112 = vld [vmem:[#allocation5 + $0xb0] sm:$0xff]
    %v113 = vld [vmem:[#allocation5 + $0xb8] sm:$0xff]
    %v114 = vld [vmem:[#allocation5 + $0xc0] sm:$0xff]
    %v115 = vld [vmem:[#allocation5 + $0xc8] sm:$0xff]
    %v116 = vld [vmem:[#allocation5 + $0xd0] sm:$0xff]
    %v117 = vld [vmem:[#allocation5 + $0xd8] sm:$0xff]
    %v118 = vld [vmem:[#allocation5 + $0xe0] sm:$0xff]
    %v119 = vld [vmem:[#allocation5 + $0xe8] sm:$0xff]
    %v120 = vld [vmem:[#allocation5 + $0xf0] sm:$0xff]
    %v121 = vld [vmem:[#allocation5 + $0xf8] sm:$0xff]
    %v122 = vld [vmem:[#allocation5 + $0x100] sm:$0xff]
    %v123 = vld [vmem:[#allocation5 + $0x108] sm:$0xff]
    %v124 = vld [vmem:[#allocation5 + $0x110] sm:$0xff]
    %v125 = vld [vmem:[#allocation5 + $0x118] sm:$0xff]
    %v126 = vld [vmem:[#allocation5 + $0x120] sm:$0xff]
    %v127 = vld [vmem:[#allocation5 + $0x128] sm:$0xff]
    %v128 = vld [vmem:[#allocation5 + $0x130] sm:$0xff]
    %v129 = vld [vmem:[#allocation5 + $0x138] sm:$0xff]
    %v130 = vld [vmem:[#allocation5 + $0x140] sm:$0xff]
    %v131 = vld [vmem:[#allocation5 + $0x148] sm:$0xff]
    %v132 = vld [vmem:[#allocation5 + $0x150] sm:$0xff]
    %v133 = vld [vmem:[#allocation5 + $0x158] sm:$0xff]
    %v134 = vld [vmem:[#allocation5 + $0x160] sm:$0xff]
    %v135 = vld [vmem:[#allocation5 + $0x168] sm:$0xff]
    %v136 = vld [vmem:[#allocation5 + $0x170] sm:$0xff]
    %v137 = vld [vmem:[#allocation5 + $0x178] sm:$0xff]
    %v138 = vld [vmem:[#allocation5 + $0x180] sm:$0xff]
    %v139 = vld [vmem:[#allocation5 + $0x188] sm:$0xff]
    %v140 = vld [vmem:[#allocation5 + $0x190] sm:$0xff]
    %v141 = vld [vmem:[#allocation5 + $0x198] sm:$0xff]
    %v142 = vld [vmem:[#allocation5 + $0x1a0] sm:$0xff]
    %v143 = vld [vmem:[#allocation5 + $0x1a8] sm:$0xff]
    %v144 = vld [vmem:[#allocation5 + $0x1b0] sm:$0xff]
    %v145 = vld [vmem:[#allocation5 + $0x1b8] sm:$0xff]
    %v146 = vld [vmem:[#allocation5 + $0x1c0] sm:$0xff]
    %v147 = vld [vmem:[#allocation5 + $0x1c8] sm:$0xff]
    %v148 = vld [vmem:[#allocation5 + $0x1d0] sm:$0xff]
    %v149 = vld [vmem:[#allocation5 + $0x1d8] sm:$0xff]
    %v150 = vld [vmem:[#allocation5 + $0x1e0] sm:$0xff]
    %v151 = vld [vmem:[#allocation5 + $0x1e8] sm:$0xff]
    %v152 = vld [vmem:[#allocation5 + $0x1f0] sm:$0xff]
    %v153 = vld [vmem:[#allocation5 + $0x1f8] sm:$0xff]
    %v154 = vld [vmem:[#allocation5 + $0x200] sm:$0xff]
    %v155 = vld [vmem:[#allocation5 + $0x208] sm:$0xff]
    %v156 = vld [vmem:[#allocation5 + $0x210] sm:$0xff]
    %v157 = vld [vmem:[#allocation5 + $0x218] sm:$0xff]
    %v158 = vld [vmem:[#allocation5 + $0x220] sm:$0xff]
    %v159 = vld [vmem:[#allocation5 + $0x228] sm:$0xff]
    %v160 = vld [vmem:[#allocation5 + $0x230] sm:$0xff]
    %v161 = vld [vmem:[#allocation5 + $0x238] sm:$0xff]
    %v162 = vld [vmem:[#allocation5 + $0x240] sm:$0xff]
    %v163 = vld [vmem:[#allocation5 + $0x248] sm:$0xff]
    %v164 = vld [vmem:[#allocation5 + $0x250] sm:$0xff]
    %v165 = vld [vmem:[#allocation5 + $0x258] sm:$0xff]
    %v166 = vld [vmem:[#allocation5 + $0x260] sm:$0xff]
    %v167 = vld [vmem:[#allocation5 + $0x268] sm:$0xff]
    %v168 = vld [vmem:[#allocation5 + $0x270] sm:$0xff]
    %v169 = vld [vmem:[#allocation5 + $0x278] sm:$0xff]
    %v170 = vld [vmem:[#allocation5 + $0x280] sm:$0xff]
    %v171 = vld [vmem:[#allocation5 + $0x288] sm:$0xff]
    %v172 = vld [vmem:[#allocation5 + $0x290] sm:$0xff]
    %v173 = vld [vmem:[#allocation5 + $0x298] sm:$0xff]
    %v174 = vld [vmem:[#allocation5 + $0x2a0] sm:$0xff]
    %v175 = vld [vmem:[#allocation5 + $0x2a8] sm:$0xff]
    %v176 = vld [vmem:[#allocation5 + $0x2b0] sm:$0xff]
    %v177 = vld [vmem:[#allocation5 + $0x2b8] sm:$0xff]
    %v178 = vld [vmem:[#allocation5 + $0x2c0] sm:$0xff]
    %v179 = vld [vmem:[#allocation5 + $0x2c8] sm:$0xff]
    %v180 = vld [vmem:[#allocation5 + $0x2d0] sm:$0xff]
    %v181 = vld [vmem:[#allocation5 + $0x2d8] sm:$0xff]
    %v182 = vld [vmem:[#allocation5 + $0x2e0] sm:$0xff]
    %v183 = vld [vmem:[#allocation5 + $0x2e8] sm:$0xff]
    %v184 = vld [vmem:[#allocation5 + $0x2f0] sm:$0xff]
    %v185 = vld [vmem:[#allocation5 + $0x2f8] sm:$0xff]
    %v186 = vld [vmem:[#allocation5 + $0x300] sm:$0xff]
    %v187 = vld [vmem:[#allocation5 + $0x308] sm:$0xff]
    %v188 = vld [vmem:[#allocation7] sm:$0x1]
    %v190 = vlaneseq
    %v191 = vshrl.u32 %v190, 7
    %v192 = vsub.s32 0, %v191
    %v193 = vrot.slane %v188, %v192
    %vm195 = vcmask 130048
    %v197 = vsel %vm195, %v89, 0
    %199 = vmatprep.subr.mxu0 0.0
    %200 = vmatpush1.msra.mxu0 %v90
    %201 = vmatprep.subr.mxu0 0.0
    %202 = vmatpush1.msra.mxu0 %v91
    %203 = vmatprep.subr.mxu0 0.0
    %204 = vmatpush1.msra.mxu0 %v92
    %205 = vmatprep.subr.mxu0 0.0
    %206 = vmatpush1.msra.mxu0 %v93
    %207 = vmatprep.subr.mxu0 0.0
    %208 = vmatpush1.msra.mxu0 %v94
    %209 = vmatprep.subr.mxu0 0.0
    %210 = vmatpush1.msra.mxu0 %v95
    %211 = vmatprep.subr.mxu0 0.0
    %212 = vmatpush1.msra.mxu0 %v96
    %213 = vmatprep.subr.mxu0 0.0
    %214 = vmatpush1.msra.mxu0 %v97
    %215 = vmatprep.subr.mxu0 0.0
    %216 = vmatpush1.msra.mxu0 %v98
    %217 = vmatprep.subr.mxu0 0.0
    %218 = vmatpush1.msra.mxu0 %v99
    %219 = vmatprep.subr.mxu0 0.0
    %220 = vmatpush1.msra.mxu0 %v100
    %221 = vmatprep.subr.mxu0 0.0
    %222 = vmatpush1.msra.mxu0 %v101
    %223 = vmatprep.subr.mxu0 0.0
    %224 = vmatpush1.msra.mxu0 %v102
    %225 = vmatprep.subr.mxu0 0.0
    %226 = vmatpush1.msra.mxu0 %v103
    %227 = vmatprep.subr.mxu0 0.0
    %228 = vmatpush1.msra.mxu0 %v104
    %229 = vmatprep.subr.mxu0 0.0
    %230 = vmatpush1.msra.mxu0 %v105
    %231 = vmatprep.subr.mxu0 0.0
    %232 = vmatpush1.msra.mxu0 %v106
    %233 = vmatprep.subr.mxu0 0.0
    %234 = vmatpush1.msra.mxu0 %v107
    %235 = vmatprep.subr.mxu0 0.0
    %236 = vmatpush1.msra.mxu0 %v108
    %237 = vmatprep.subr.mxu0 0.0
    %238 = vmatpush1.msra.mxu0 %v109
    %239 = vmatprep.subr.mxu0 0.0
    %240 = vmatpush1.msra.mxu0 %v110
    %241 = vmatprep.subr.mxu0 0.0
    %242 = vmatpush1.msra.mxu0 %v111
    %243 = vmatprep.subr.mxu0 0.0
    %244 = vmatpush1.msra.mxu0 %v112
    %245 = vmatprep.subr.mxu0 0.0
    %246 = vmatpush1.msra.mxu0 %v113
    %247 = vmatprep.subr.mxu0 0.0
    %248 = vmatpush1.msra.mxu0 %v114
    %249 = vmatprep.subr.mxu0 0.0
    %250 = vmatpush1.msra.mxu0 %v115
    %251 = vmatprep.subr.mxu0 0.0
    %252 = vmatpush1.msra.mxu0 %v116
    %253 = vmatprep.subr.mxu0 0.0
    %254 = vmatpush1.msra.mxu0 %v117
    %255 = vmatprep.subr.mxu0 0.0
    %256 = vmatpush1.msra.mxu0 %v118
    %257 = vmatprep.subr.mxu0 0.0
    %258 = vmatpush1.msra.mxu0 %v119
    %259 = vmatprep.subr.mxu0 0.0
    %260 = vmatpush1.msra.mxu0 %v120
    %261 = vmatprep.subr.mxu0 0.0
    %262 = vmatpush1.msra.mxu0 %v121
    %263 = vmatprep.mubr.f32.mxu0 %v84
    %264 = vmatmul.mubr.f32.gmra.mrb[0].mxu0 %v83
    %v265 = vpop.f32.mrb[0].mxu0
    %v266 = vadd.f32 %v193, %v265
    %v267 = vpop.f32.mrb[0].mxu0
    %268 = vdwg.mxu0
    %269 = vmatprep.subr.mxu0 0.0
    %270 = vmatpush1.msra.mxu0 %v122
    %271 = vmatprep.subr.mxu0 0.0
    %272 = vmatpush1.msra.mxu0 %v123
    %273 = vmatprep.subr.mxu0 0.0
    %274 = vmatpush1.msra.mxu0 %v124
    %275 = vmatprep.subr.mxu0 0.0
    %276 = vmatpush1.msra.mxu0 %v125
    %277 = vmatprep.subr.mxu0 0.0
    %278 = vmatpush1.msra.mxu0 %v126
    %279 = vmatprep.subr.mxu0 0.0
    %280 = vmatpush1.msra.mxu0 %v127
    %281 = vmatprep.subr.mxu0 0.0
    %282 = vmatpush1.msra.mxu0 %v128
    %283 = vmatprep.subr.mxu0 0.0
    %284 = vmatpush1.msra.mxu0 %v129
    %285 = vmatprep.subr.mxu0 0.0
    %286 = vmatpush1.msra.mxu0 %v130
    %287 = vmatprep.subr.mxu0 0.0
    %288 = vmatpush1.msra.mxu0 %v131
    %289 = vmatprep.subr.mxu0 0.0
    %290 = vmatpush1.msra.mxu0 %v132
    %291 = vmatprep.subr.mxu0 0.0
    %292 = vmatpush1.msra.mxu0 %v133
    %293 = vmatprep.subr.mxu0 0.0
    %294 = vmatpush1.msra.mxu0 %v134
    %295 = vmatprep.subr.mxu0 0.0
    %296 = vmatpush1.msra.mxu0 %v135
    %297 = vmatprep.subr.mxu0 0.0
    %298 = vmatpush1.msra.mxu0 %v136
    %299 = vmatprep.subr.mxu0 0.0
    %300 = vmatpush1.msra.mxu0 %v137
    %301 = vmatprep.subr.mxu0 0.0
    %302 = vmatpush1.msra.mxu0 %v138
    %303 = vmatprep.subr.mxu0 0.0
    %304 = vmatpush1.msra.mxu0 %v139
    %305 = vmatprep.subr.mxu0 0.0
    %306 = vmatpush1.msra.mxu0 %v140
    %307 = vmatprep.subr.mxu0 0.0
    %308 = vmatpush1.msra.mxu0 %v141
    %309 = vmatprep.subr.mxu0 0.0
    %310 = vmatpush1.msra.mxu0 %v142
    %311 = vmatprep.subr.mxu0 0.0
    %312 = vmatpush1.msra.mxu0 %v143
    %313 = vmatprep.subr.mxu0 0.0
    %314 = vmatpush1.msra.mxu0 %v144
    %315 = vmatprep.subr.mxu0 0.0
    %316 = vmatpush1.msra.mxu0 %v145
    %317 = vmatprep.subr.mxu0 0.0
    %318 = vmatpush1.msra.mxu0 %v146
    %319 = vmatprep.subr.mxu0 0.0
    %320 = vmatpush1.msra.mxu0 %v147
    %321 = vmatprep.subr.mxu0 0.0
    %322 = vmatpush1.msra.mxu0 %v148
    %323 = vmatprep.subr.mxu0 0.0
    %324 = vmatpush1.msra.mxu0 %v149
    %325 = vmatprep.subr.mxu0 0.0
    %326 = vmatpush1.msra.mxu0 %v150
    %327 = vmatprep.subr.mxu0 0.0
    %328 = vmatpush1.msra.mxu0 %v151
    %329 = vmatprep.subr.mxu0 0.0
    %330 = vmatpush1.msra.mxu0 %v152
    %331 = vmatprep.subr.mxu0 0.0
    %332 = vmatpush1.msra.mxu0 %v153
    %333 = vmatprep.mubr.f32.mxu0 %v86
    %334 = vmatmul.mubr.f32.gmra.mrb[0].mxu0 %v85
    %v335 = vpop.f32.mrb[0].mxu0
    %v336 = vadd.f32 %v266, %v335
    %v337 = vpop.f32.mrb[0].mxu0
    %338 = vdwg.mxu0
    %339 = vmatprep.subr.mxu0 0.0
    %340 = vmatpush1.msra.mxu0 %v154
    %341 = vmatprep.subr.mxu0 0.0
    %342 = vmatpush1.msra.mxu0 %v155
    %343 = vmatprep.subr.mxu0 0.0
    %344 = vmatpush1.msra.mxu0 %v156
    %345 = vmatprep.subr.mxu0 0.0
    %346 = vmatpush1.msra.mxu0 %v157
    %347 = vmatprep.subr.mxu0 0.0
    %348 = vmatpush1.msra.mxu0 %v158
    %349 = vmatprep.subr.mxu0 0.0
    %350 = vmatpush1.msra.mxu0 %v159
    %351 = vmatprep.subr.mxu0 0.0
    %352 = vmatpush1.msra.mxu0 %v160
    %353 = vmatprep.subr.mxu0 0.0
    %354 = vmatpush1.msra.mxu0 %v161
    %355 = vmatprep.subr.mxu0 0.0
    %356 = vmatpush1.msra.mxu0 %v162
    %357 = vmatprep.subr.mxu0 0.0
    %358 = vmatpush1.msra.mxu0 %v163
    %359 = vmatprep.subr.mxu0 0.0
    %360 = vmatpush1.msra.mxu0 %v164
    %361 = vmatprep.subr.mxu0 0.0
    %362 = vmatpush1.msra.mxu0 %v165
    %363 = vmatprep.subr.mxu0 0.0
    %364 = vmatpush1.msra.mxu0 %v166
    %365 = vmatprep.subr.mxu0 0.0
    %366 = vmatpush1.msra.mxu0 %v167
    %367 = vmatprep.subr.mxu0 0.0
    %368 = vmatpush1.msra.mxu0 %v168
    %369 = vmatprep.subr.mxu0 0.0
    %370 = vmatpush1.msra.mxu0 %v169
    %371 = vmatprep.subr.mxu0 0.0
    %372 = vmatpush1.msra.mxu0 %v170
    %373 = vmatprep.subr.mxu0 0.0
    %374 = vmatpush1.msra.mxu0 %v171
    %375 = vmatprep.subr.mxu0 0.0
    %376 = vmatpush1.msra.mxu0 %v172
    %377 = vmatprep.subr.mxu0 0.0
    %378 = vmatpush1.msra.mxu0 %v173
    %379 = vmatprep.subr.mxu0 0.0
    %380 = vmatpush1.msra.mxu0 %v174
    %381 = vmatprep.subr.mxu0 0.0
    %382 = vmatpush1.msra.mxu0 %v175
    %383 = vmatprep.subr.mxu0 0.0
    %384 = vmatpush1.msra.mxu0 %v176
    %385 = vmatprep.subr.mxu0 0.0
    %386 = vmatpush1.msra.mxu0 %v177
    %387 = vmatprep.subr.mxu0 0.0
    %388 = vmatpush1.msra.mxu0 %v178
    %389 = vmatprep.subr.mxu0 0.0
    %390 = vmatpush1.msra.mxu0 %v179
    %391 = vmatprep.subr.mxu0 0.0
    %392 = vmatpush1.msra.mxu0 %v180
    %393 = vmatprep.subr.mxu0 0.0
    %394 = vmatpush1.msra.mxu0 %v181
    %395 = vmatprep.subr.mxu0 0.0
    %396 = vmatpush1.msra.mxu0 %v182
    %397 = vmatprep.subr.mxu0 0.0
    %398 = vmatpush1.msra.mxu0 %v183
    %399 = vmatprep.subr.mxu0 0.0
    %400 = vmatpush1.msra.mxu0 %v184
    %401 = vmatprep.subr.mxu0 0.0
    %402 = vmatpush1.msra.mxu0 %v185
    %403 = vmatprep.mubr.f32.mxu0 %v88
    %404 = vmatmul.mubr.f32.gmra.mrb[0].mxu0 %v87
    %v405 = vpop.f32.mrb[0].mxu0
    %v406 = vadd.f32 %v336, %v405
    %v407 = vpop.f32.mrb[0].mxu0
    %408 = vdwg.mxu0
    %409 = vmatprep.subr.mxu0 0.0
    %410 = vmatpush1.msra.mxu0 %v186
    %411 = vmatprep.subr.mxu0 0.0
    %412 = vmatpush1.msra.mxu0 %v187
    %413 = vmatprep.subr.mxu0 0.0
    %414 = vmatpush1.msra.mxu0 0.0
    %415 = vmatprep.subr.mxu0 0.0
    %416 = vmatpush1.msra.mxu0 0.0
    %417 = vmatprep.subr.mxu0 0.0
    %418 = vmatpush1.msra.mxu0 0.0
    %419 = vmatprep.subr.mxu0 0.0
    %420 = vmatpush1.msra.mxu0 0.0
    %421 = vmatprep.subr.mxu0 0.0
    %422 = vmatpush1.msra.mxu0 0.0
    %423 = vmatprep.subr.mxu0 0.0
    %424 = vmatpush1.msra.mxu0 0.0
    %425 = vmatprep.subr.mxu0 0.0
    %426 = vmatpush1.msra.mxu0 0.0
    %427 = vmatprep.subr.mxu0 0.0
    %428 = vmatpush1.msra.mxu0 0.0
    %429 = vmatprep.subr.mxu0 0.0
    %430 = vmatpush1.msra.mxu0 0.0
    %431 = vmatprep.subr.mxu0 0.0
    %432 = vmatpush1.msra.mxu0 0.0
    %433 = vmatprep.subr.mxu0 0.0
    %434 = vmatpush1.msra.mxu0 0.0
    %435 = vmatprep.subr.mxu0 0.0
    %436 = vmatpush1.msra.mxu0 0.0
    %437 = vmatprep.subr.mxu0 0.0
    %438 = vmatpush1.msra.mxu0 0.0
    %439 = vmatprep.subr.mxu0 0.0
    %440 = vmatpush1.msra.mxu0 0.0
    %441 = vmatprep.subr.mxu0 0.0
    %442 = vmatpush1.msra.mxu0 0.0
    %443 = vmatprep.subr.mxu0 0.0
    %444 = vmatpush1.msra.mxu0 0.0
    %445 = vmatprep.subr.mxu0 0.0
    %446 = vmatpush1.msra.mxu0 0.0
    %447 = vmatprep.subr.mxu0 0.0
    %448 = vmatpush1.msra.mxu0 0.0
    %449 = vmatprep.subr.mxu0 0.0
    %450 = vmatpush1.msra.mxu0 0.0
    %451 = vmatprep.subr.mxu0 0.0
    %452 = vmatpush1.msra.mxu0 0.0
    %453 = vmatprep.subr.mxu0 0.0
    %454 = vmatpush1.msra.mxu0 0.0
    %455 = vmatprep.subr.mxu0 0.0
    %456 = vmatpush1.msra.mxu0 0.0
    %457 = vmatprep.subr.mxu0 0.0
    %458 = vmatpush1.msra.mxu0 0.0
    %459 = vmatprep.subr.mxu0 0.0
    %460 = vmatpush1.msra.mxu0 0.0
    %461 = vmatprep.subr.mxu0 0.0
    %462 = vmatpush1.msra.mxu0 0.0
    %463 = vmatprep.subr.mxu0 0.0
    %464 = vmatpush1.msra.mxu0 0.0
    %465 = vmatprep.subr.mxu0 0.0
    %466 = vmatpush1.msra.mxu0 0.0
    %467 = vmatprep.subr.mxu0 0.0
    %468 = vmatpush1.msra.mxu0 0.0
    %469 = vmatprep.subr.mxu0 0.0
    %470 = vmatpush1.msra.mxu0 0.0
    %471 = vmatprep.subr.mxu0 0.0
    %472 = vmatpush1.msra.mxu0 0.0
    %473 = vmatprep.mubr.f32.mxu0 0.0
    %474 = vmatmul.mubr.f32.gmra.mrb[0].mxu0 %v197
    %v475 = vpop.f32.mrb[0].mxu0
    %v476 = vadd.f32 %v406, %v475
    %v477 = vpop.f32.mrb[0].mxu0
    %478 = vdwg.mxu0
    %v479 = vmax.f32 %v476, 0.0
    %v480 = vld [vmem:[#allocation8] sm:$0xff]
    %v481 = vld [vmem:[#allocation8 + $0x8] sm:$0xff]
    %v482 = vld [vmem:[#allocation8 + $0x10] sm:$0xff]
    %v483 = vld [vmem:[#allocation8 + $0x18] sm:$0xff]
    %v484 = vld [vmem:[#allocation8 + $0x20] sm:$0xff]
    %v485 = vld [vmem:[#allocation8 + $0x28] sm:$0xff]
    %v486 = vld [vmem:[#allocation8 + $0x30] sm:$0xff]
    %v487 = vld [vmem:[#allocation8 + $0x38] sm:$0xff]
    %v488 = vld [vmem:[#allocation8 + $0x40] sm:$0xff]
    %v489 = vld [vmem:[#allocation8 + $0x48] sm:$0xff]
    %v490 = vld [vmem:[#allocation8 + $0x50] sm:$0xff]
    %v491 = vld [vmem:[#allocation8 + $0x58] sm:$0xff]
    %v492 = vld [vmem:[#allocation8 + $0x60] sm:$0xff]
    %v493 = vld [vmem:[#allocation8 + $0x68] sm:$0xff]
    %v494 = vld [vmem:[#allocation8 + $0x70] sm:$0xff]
    %v495 = vld [vmem:[#allocation8 + $0x78] sm:$0xff]
    %v496 = vld [vmem:[#allocation10] sm:$0x1]
    %v498 = vlaneseq
    %v499 = vshrl.u32 %v498, 7
    %v500 = vsub.s32 0, %v499
    %v501 = vrot.slane %v496, %v500
    %503 = vmatprep.subr.mxu0 0.0
    %504 = vmatpush1.msra.mxu0 %v480
    %505 = vmatprep.subr.mxu0 0.0
    %506 = vmatpush1.msra.mxu0 %v481
    %507 = vmatprep.subr.mxu0 0.0
    %508 = vmatpush1.msra.mxu0 %v482
    %509 = vmatprep.subr.mxu0 0.0
    %510 = vmatpush1.msra.mxu0 %v483
    %511 = vmatprep.subr.mxu0 0.0
    %512 = vmatpush1.msra.mxu0 %v484
    %513 = vmatprep.subr.mxu0 0.0
    %514 = vmatpush1.msra.mxu0 %v485
    %515 = vmatprep.subr.mxu0 0.0
    %516 = vmatpush1.msra.mxu0 %v486
    %517 = vmatprep.subr.mxu0 0.0
    %518 = vmatpush1.msra.mxu0 %v487
    %519 = vmatprep.subr.mxu0 0.0
    %520 = vmatpush1.msra.mxu0 %v488
    %521 = vmatprep.subr.mxu0 0.0
    %522 = vmatpush1.msra.mxu0 %v489
    %523 = vmatprep.subr.mxu0 0.0
    %524 = vmatpush1.msra.mxu0 %v490
    %525 = vmatprep.subr.mxu0 0.0
    %526 = vmatpush1.msra.mxu0 %v491
    %527 = vmatprep.subr.mxu0 0.0
    %528 = vmatpush1.msra.mxu0 %v492
    %529 = vmatprep.subr.mxu0 0.0
    %530 = vmatpush1.msra.mxu0 %v493
    %531 = vmatprep.subr.mxu0 0.0
    %532 = vmatpush1.msra.mxu0 %v494
    %533 = vmatprep.subr.mxu0 0.0
    %534 = vmatpush1.msra.mxu0 %v495
    %535 = vmatprep.subr.mxu0 0.0
    %536 = vmatpush1.msra.mxu0 0.0
    %537 = vmatprep.subr.mxu0 0.0
    %538 = vmatpush1.msra.mxu0 0.0
    %539 = vmatprep.subr.mxu0 0.0
    %540 = vmatpush1.msra.mxu0 0.0
    %541 = vmatprep.subr.mxu0 0.0
    %542 = vmatpush1.msra.mxu0 0.0
    %543 = vmatprep.subr.mxu0 0.0
    %544 = vmatpush1.msra.mxu0 0.0
    %545 = vmatprep.subr.mxu0 0.0
    %546 = vmatpush1.msra.mxu0 0.0
    %547 = vmatprep.subr.mxu0 0.0
    %548 = vmatpush1.msra.mxu0 0.0
    %549 = vmatprep.subr.mxu0 0.0
    %550 = vmatpush1.msra.mxu0 0.0
    %551 = vmatprep.subr.mxu0 0.0
    %552 = vmatpush1.msra.mxu0 0.0
    %553 = vmatprep.subr.mxu0 0.0
    %554 = vmatpush1.msra.mxu0 0.0
    %555 = vmatprep.subr.mxu0 0.0
    %556 = vmatpush1.msra.mxu0 0.0
    %557 = vmatprep.subr.mxu0 0.0
    %558 = vmatpush1.msra.mxu0 0.0
    %559 = vmatprep.subr.mxu0 0.0
    %560 = vmatpush1.msra.mxu0 0.0
    %561 = vmatprep.subr.mxu0 0.0
    %562 = vmatpush1.msra.mxu0 0.0
    %563 = vmatprep.subr.mxu0 0.0
    %564 = vmatpush1.msra.mxu0 0.0
    %565 = vmatprep.subr.mxu0 0.0
    %566 = vmatpush1.msra.mxu0 0.0
    %567 = vmatprep.mubr.f32.mxu0 0.0
    %568 = vmatmul.mubr.f32.gmra.mrb[0].mxu0 %v479
    %v569 = vpop.f32.mrb[0].mxu0
    %v570 = vadd.f32 %v501, %v569
    %v571 = vpop.f32.mrb[0].mxu0
    %572 = vdwg.mxu0
    %vm573 = vcmask 80896
    %v574 = vsel %vm573, %v570, -inf
    %575 = vmax.xlane.f32.xlu0 %v574
    %v576 = vpop.xlane.xlu0 %575
    %v577 = vsub.f32 %v570, %v576
    %v578 = vmul.f32 %v577, 1.442695
    %v579 = vpow.pop %v578
    %v580 = vsel %vm573, %v579, 0.0
    %581 = vadd.xlane.f32.xlu0 %v580
    %v582 = vpop.xlane.xlu0 %581
    %v583 = vlog2.pop %v582
    %v584 = vmul.f32 %v583, 0.6931472
    %v585 = vsub.f32 %v577, %v584
    %586 = vst.msk [vmem:[#allocation11] sm:$0xff] %vm573, %v585
    // Predicated region
    $region42: #{network_forward.1} parent=1 // pred_check
      _
    $region43: #{network_forward.1} parent=1 // pred_check_branch
      %588 = sbr.rel (0) target = $region45
    $region44: #{network_forward.1} parent=1 // pred_region
      %s590 = ssub.s32 128, 128
      %591 = vsyncadd [#allocation4], %s590
      %s593 = sshll.u32 [#allocation11], 4
      %s594 = int_to_ptr.vmem [resolvable:$true] %s593
      %596 = dma.vmem_to_hbm [thread:$0]  %s594, 128, %s5, [#allocation4]
    $region45: #{network_forward.1} parent=1 // pred_fallthru
      _
    // Predicated region
    $region46: #{network_forward.1} parent=1 // pred_check
      _
    $region47: #{network_forward.1} parent=1 // pred_check_branch
      %598 = sbr.rel (0) target = $region49
    $region48: #{network_forward.1} parent=1 // pred_region
      %599 = dma.done [#allocation4], 128
    $region49: #{network_forward.1} parent=1 // pred_fallthru
      _
    %600 = vsyncpa [#allocation3], 1
    %601 = vsyncpa [#allocation6], 1
    %602 = vsyncpa [#allocation9], 1
    %603 = vsyncpa [#allocation4], 1

</llo_original>
